<compile_context>
chip_gen: v7x
topology: tpu7x:2x2x1
jax: 0.10.0
libtpu: 0.0.40
codegen_flags: <defaults>
</compile_context>

<pallas_src>
import functools

import jax
import jax.numpy as jnp
from jax import lax
from jax.experimental import pallas as pl
from jax.experimental.pallas import tpu as pltpu

_VMEM_LIMIT = 32 * 1024 * 1024          # explicit scoped-VMEM budget (all gens)
_RESIDENT_WEIGHT_BYTES = 8 * 1024 * 1024  # keep weight resident below this


def _round_up(x, m):
    return (x + m - 1) // m * m


def _pick_tile(dim, candidates):
    """Largest candidate that evenly divides `dim`; otherwise the full dim."""
    for c in candidates:
        if c <= dim and dim % c == 0:
            return c
    return dim


def _rep_lanes(x, width):
    """x: (rows, 128) lane-replicated; return (rows, width) with same values."""
    if width == 128:
        return x
    if width < 128:
        return x[:, :width]
    reps = (width + 127) // 128
    t = jnp.tile(x, (1, reps))
    return t if t.shape[-1] == width else t[:, :width]


# ---------------------------------------------------------------------------
# Linear: y = x @ w.  Weight-resident path (weight fetched once) when it fits,
# K-tiled accumulation fallback otherwise.
# ---------------------------------------------------------------------------
def _linear_resident_kernel(x_ref, w_ref, o_ref, *, compute_dtype):
    o_ref[...] = jnp.dot(x_ref[...].astype(compute_dtype), w_ref[...],
                         preferred_element_type=jnp.float32).astype(o_ref.dtype)


def _linear_tiled_kernel(x_ref, w_ref, o_ref, acc_ref, *, compute_dtype):
    @pl.when(pl.program_id(2) == 0)
    def _():
        acc_ref[...] = jnp.zeros_like(acc_ref)

    acc_ref[...] += jnp.dot(x_ref[...].astype(compute_dtype), w_ref[...],
                            preferred_element_type=jnp.float32)

    @pl.when(pl.program_id(2) == pl.num_programs(2) - 1)
    def _():
        o_ref[...] = acc_ref[...].astype(o_ref.dtype)


def pallas_linear(x2d, w, *, compute_dtype, out_dtype=None):
    M, K = x2d.shape
    K2, N = w.shape
    assert K == K2
    out_dtype = out_dtype or x2d.dtype
    tm = _pick_tile(M, (256, 128, 64, 32, 16, 8))
    w_bytes = K * N * jnp.dtype(compute_dtype).itemsize

    if w_bytes <= _RESIDENT_WEIGHT_BYTES:
        # Constant weight block index -> DMA'd once, resident across all row
        # tiles; no accumulator, no init/finalize phases.
        return pl.pallas_call(
            functools.partial(_linear_resident_kernel,
                              compute_dtype=compute_dtype),
            out_shape=jax.ShapeDtypeStruct((M, N), out_dtype),
            grid=(M // tm,),
            in_specs=[pl.BlockSpec((tm, K), lambda i: (i, 0)),
                      pl.BlockSpec((K, N), lambda i: (0, 0))],
            out_specs=pl.BlockSpec((tm, N), lambda i: (i, 0)),
            compiler_params=pltpu.CompilerParams(
                dimension_semantics=("parallel",),
                vmem_limit_bytes=_VMEM_LIMIT),
        )(x2d, w)

    # Fallback: K-tiled accumulation for weights too large to keep resident.
    tn = _pick_tile(N, (256, 128))
    tk = _pick_tile(K, (256, 128))
    return pl.pallas_call(
        functools.partial(_linear_tiled_kernel, compute_dtype=compute_dtype),
        out_shape=jax.ShapeDtypeStruct((M, N), out_dtype),
        grid=(M // tm, N // tn, K // tk),
        in_specs=[pl.BlockSpec((tm, tk), lambda i, j, k: (i, k)),
                  pl.BlockSpec((tk, tn), lambda i, j, k: (k, j))],
        out_specs=pl.BlockSpec((tm, tn), lambda i, j, k: (i, j)),
        scratch_shapes=[pltpu.VMEM((tm, tn), jnp.float32)],
        compiler_params=pltpu.CompilerParams(
            dimension_semantics=("parallel", "parallel", "arbitrary"),
            vmem_limit_bytes=_VMEM_LIMIT),
    )(x2d, w)


# ---------------------------------------------------------------------------
# Fused QKV projection with the (scale-folded, bf16) weight resident in VMEM.
# q / k / v are written as three separate lane-dense bf16 outputs, so the
# combined (B*N, 3*inner) tensor never round-trips HBM.
# ---------------------------------------------------------------------------
def _qkv_proj_kernel(x_ref, w_ref, q_ref, k_ref, v_ref, *, compute_dtype):
    acc = jnp.dot(x_ref[...].astype(compute_dtype), w_ref[...],
                  preferred_element_type=jnp.float32)
    inner = q_ref.shape[-1]
    q_ref[...] = acc[:, :inner].astype(q_ref.dtype)
    k_ref[...] = acc[:, inner:2 * inner].astype(k_ref.dtype)
    v_ref[...] = acc[:, 2 * inner:].astype(v_ref.dtype)


def pallas_qkv_proj(x2d, w_qkv, inner_dim, *, compute_dtype):
    M, K = x2d.shape
    K2, QKV = w_qkv.shape
    assert K == K2 and QKV == 3 * inner_dim
    w_bytes = K * QKV * jnp.dtype(compute_dtype).itemsize
    if w_bytes > _RESIDENT_WEIGHT_BYTES:
        # Oversized weight: fall back to the generic K-tiled linear + split.
        proj = pallas_linear(x2d, w_qkv, compute_dtype=compute_dtype,
                             out_dtype=compute_dtype)
        return (proj[:, :inner_dim], proj[:, inner_dim:2 * inner_dim],
                proj[:, 2 * inner_dim:])

    tm = _pick_tile(M, (256, 128, 64, 32, 16, 8))
    out_sds = jax.ShapeDtypeStruct((M, inner_dim), compute_dtype)
    out_spec = pl.BlockSpec((tm, inner_dim), lambda i: (i, 0))
    return pl.pallas_call(
        functools.partial(_qkv_proj_kernel, compute_dtype=compute_dtype),
        out_shape=(out_sds, out_sds, out_sds),
        grid=(M // tm,),
        in_specs=[pl.BlockSpec((tm, K), lambda i: (i, 0)),
                  pl.BlockSpec((K, QKV), lambda i: (0, 0))],   # resident weight
        out_specs=(out_spec, out_spec, out_spec),
        compiler_params=pltpu.CompilerParams(
            dimension_semantics=("parallel",),
            vmem_limit_bytes=_VMEM_LIMIT),
    )(x2d, w_qkv)


# ---------------------------------------------------------------------------
# Flash-style multi-head attention core.
#   q, k, v: (B, N_pad, H*Dh) lane-dense bf16 slabs; grid (B, N//tq, N//tk),
#   KV axis last ("arbitrary").  m/l are lane-replicated f32, acc is one
#   lane-dense (tq, H*Dh) f32 slab.
# ---------------------------------------------------------------------------
def _flash_attn_kernel(q_ref, k_ref, v_ref, o_ref, m_sc, l_sc, acc_sc,
                       *, heads, dim_head, scale, seq_len, need_mask):
    ki = pl.program_id(2)
    tk = k_ref.shape[1]

    @pl.when(ki == 0)
    def _():
        m_sc[...] = jnp.full_like(m_sc, -jnp.inf)
        l_sc[...] = jnp.zeros_like(l_sc)
        acc_sc[...] = jnp.zeros_like(acc_sc)

    q = q_ref[0]                  # (tq, H*Dh), bf16 (no per-step scale/cast)
    k = k_ref[0]
    v = v_ref[0]
    if scale != 1.0:
        # just_values path only: scale cannot be folded into the shared
        # projection weight (it would scale v too); apply once, in f32.
        q = (q.astype(jnp.float32) * scale).astype(q_ref.dtype)

    key_mask = None
    if need_mask:
        col = lax.broadcasted_iota(jnp.int32, (q.shape[0], tk), 1) + ki * tk
        key_mask = col < seq_len

    dn_qk = (((1,), (1,)), ((), ()))   # contract last dims -> no explicit k.T
    dn_pv = (((1,), (0,)), ((), ()))

    # heads is small and static; Dh < 128 -> slab layout with per-head slices.
    for h in range(heads):
        sl = slice(h * dim_head, (h + 1) * dim_head)
        s = lax.dot_general(q[:, sl], k[:, sl], dn_qk,
                            preferred_element_type=jnp.float32)     # (tq, tk)
        if key_mask is not None:
            s = jnp.where(key_mask, s, -jnp.inf)
        m_prev = m_sc[h]                                            # (tq, 128)
        m_cur = jnp.max(s, axis=-1, keepdims=True)                  # (tq, 1)
        m_next = jnp.maximum(m_prev, m_cur)                         # (tq, 128)
        alpha = jnp.exp(m_prev - m_next)                            # full-width
        p = jnp.exp(s - _rep_lanes(m_next, tk))                     # (tq, tk)
        l_sc[h] = alpha * l_sc[h] + jnp.sum(p, axis=-1, keepdims=True)
        pv = lax.dot_general(p.astype(v_ref.dtype), v[:, sl], dn_pv,
                             preferred_element_type=jnp.float32)    # (tq, Dh)
        acc_sc[:, sl] = _rep_lanes(alpha, dim_head) * acc_sc[:, sl] + pv
        m_sc[h] = m_next

    @pl.when(ki == pl.num_programs(2) - 1)
    def _():
        for h in range(heads):
            sl = slice(h * dim_head, (h + 1) * dim_head)
            l_h = l_sc[h]
            inv = pl.reciprocal(l_h, approx=True)     # EUP slot
            inv = inv * (2.0 - l_h * inv)             # one NR step -> ~f32 exact
            acc_sc[:, sl] = acc_sc[:, sl] * _rep_lanes(inv, dim_head)
        o_ref[0] = acc_sc[...].astype(o_ref.dtype)    # single lane-dense store


def pallas_attention_core(q, k, v, *, heads, dim_head, scale, seq_len):
    B, n_pad, inner = q.shape
    assert inner == heads * dim_head
    assert n_pad % 128 == 0
    # tq=128 when needed so B * (n_pad // tq) >= 2 (v7x 2-TC split); kv tile
    # capped at 256 (VMEM headroom for the unrolled head loop on v7x).
    tq = 256 if (n_pad % 256 == 0 and B * (n_pad // 256) >= 2) else 128
    tk = 256 if n_pad % 256 == 0 else 128

    q_spec = pl.BlockSpec((1, tq, inner), lambda b, qi, ki: (b, qi, 0))
    # TODO(synk): on v5e, bump kv specs to pipeline_mode=pl.Buffered(3) if
    # xprof shows exposed KV DMA.
    kv_spec = pl.BlockSpec((1, tk, inner), lambda b, qi, ki: (b, ki, 0))
    kernel = functools.partial(
        _flash_attn_kernel, heads=heads, dim_head=dim_head, scale=scale,
        seq_len=seq_len, need_mask=(seq_len != n_pad))
    return pl.pallas_call(
        kernel,
        out_shape=jax.ShapeDtypeStruct((B, n_pad, inner), q.dtype),
        grid=(B, n_pad // tq, n_pad // tk),
        in_specs=[q_spec, kv_spec, kv_spec],
        out_specs=pl.BlockSpec((1, tq, inner), lambda b, qi, ki: (b, qi, 0)),
        scratch_shapes=[
            pltpu.VMEM((heads, tq, 128), jnp.float32),   # running max (lane-rep)
            pltpu.VMEM((heads, tq, 128), jnp.float32),   # running sum (lane-rep)
            pltpu.VMEM((tq, inner), jnp.float32),        # output accumulator slab
        ],
        compiler_params=pltpu.CompilerParams(
            dimension_semantics=("parallel", "parallel", "arbitrary"),
            vmem_limit_bytes=_VMEM_LIMIT),
    )(q, k, v)


# ---------------------------------------------------------------------------
# Full module forward: to_qkv -> multi-head attention -> to_out
# ---------------------------------------------------------------------------
def attention_forward(x, w_qkv, w_out, *, heads, dim_head, just_values=False,
                      compute_dtype=jnp.bfloat16):
    """x: (B, N, D); w_qkv: (D, qkv_dim) pre-transposed; w_out: (inner, D) or None."""
    B, N, D = x.shape
    inner_dim = heads * dim_head
    scale = dim_head ** (-0.5)

    # Pad the sequence to a multiple of 128 so the flash tiling never
    # degenerates; padded keys are masked in-kernel, padded rows sliced off.
    n_pad = _round_up(N, 128)
    if n_pad != N:
        x = jnp.pad(x, ((0, 0), (0, n_pad - N), (0, 0)))
    x2d = x.reshape(B * n_pad, D)

    if just_values:
        v = pallas_linear(x2d, w_qkv.astype(compute_dtype),
                          compute_dtype=compute_dtype,
                          out_dtype=compute_dtype).reshape(B, n_pad, inner_dim)
        q = k = v
        kernel_scale = scale            # cannot fold into the shared weight
    else:
        # Fold the softmax scale into the q columns of w_qkv (f32, host side),
        # then cast the weight to the MXU compute dtype once.
        w_prepped = jnp.concatenate(
            [w_qkv[:, :inner_dim] * scale, w_qkv[:, inner_dim:]],
            axis=-1).astype(compute_dtype)
        q2d, k2d, v2d = pallas_qkv_proj(x2d, w_prepped, inner_dim,
                                        compute_dtype=compute_dtype)
        q = q2d.reshape(B, n_pad, inner_dim)
        k = k2d.reshape(B, n_pad, inner_dim)
        v = v2d.reshape(B, n_pad, inner_dim)
        kernel_scale = 1.0

    # Attention output comes back directly as lane-dense (B, n_pad, H*Dh).
    out = pallas_attention_core(q, k, v, heads=heads, dim_head=dim_head,
                                scale=kernel_scale, seq_len=N)

    if w_out is not None:                               # project_out branch
        out2d = pallas_linear(out.reshape(B * n_pad, inner_dim),
                              w_out.astype(compute_dtype),
                              compute_dtype=compute_dtype, out_dtype=x.dtype)
        out = out2d.reshape(B, n_pad, D)
    else:                                               # Identity branch
        out = out.astype(x.dtype)
    # TODO(synk): nn.Dropout is eval-mode / p=0.0 -> identity (omitted).
    return out[:, :N, :]


# ---------------------------------------------------------------------------
# Pure-JAX f32 reference (module semantics)
# ---------------------------------------------------------------------------
def attention_reference(x, w_qkv, w_out, *, heads, dim_head):
    B, N, D = x.shape
    scale = dim_head ** (-0.5)
    proj = x @ w_qkv
    q, k, v = jnp.split(proj, 3, axis=-1)

    def to_heads(t):
        return t.reshape(B, N, heads, dim_head).transpose(0, 2, 1, 3)

    q, k, v = to_heads(q), to_heads(k), to_heads(v)
    dots = jnp.einsum("bhid,bhjd->bhij", q, k) * scale
    attn = jax.nn.softmax(dots, axis=-1)
    out = jnp.einsum("bhij,bhjd->bhid", attn, v)
    out = out.transpose(0, 2, 1, 3).reshape(B, N, heads * dim_head)
    return out @ w_out if w_out is not None else out


if __name__ == "__main__":
    # Small shapes consistent with the module forward (x: (B, N, dim)).
    # D = inner_dim = 128 keeps every HBM store full-lane; N = 200 exercises
    # the sequence-padding + key-masking path (pads to 256).
    B, N, D = 2, 200, 128
    heads, dim_head = 2, 64
    inner_dim = heads * dim_head            # 128
    qkv_dim = inner_dim * 3                 # just_values=False path

    key = jax.random.PRNGKey(0)
    kx, kq, ko = jax.random.split(key, 3)
    x = jax.random.normal(kx, (B, N, D), dtype=jnp.float32)
    # nn.Linear(dim, qkv_dim, bias=False): weight (qkv_dim, dim); stored
    # pre-transposed as (dim, qkv_dim) so kernels compute x @ W^T.
    w_qkv = jax.random.normal(kq, (D, qkv_dim), dtype=jnp.float32) / jnp.sqrt(D)
    # to_out: nn.Linear(inner_dim, dim) (project_out=True here), stored transposed.
    w_out = jax.random.normal(ko, (inner_dim, D), dtype=jnp.float32) / jnp.sqrt(inner_dim)

    out = attention_forward(x, w_qkv, w_out, heads=heads, dim_head=dim_head)
    out = jax.block_until_ready(out)

    ref = attention_reference(x, w_qkv, w_out, heads=heads, dim_head=dim_head)
    assert out.shape == (B, N, D)
    # Tolerance reflects the bf16 MXU operand path (per perf review); the
    # reference is pure f32.
    assert jnp.allclose(out, ref, atol=5e-2, rtol=5e-2), \
        "Pallas output mismatch vs reference"

    print("KERNEL_OK")
</pallas_src>

<mosaic_0001>
module attributes {stable_mosaic.version = 11 : i64} {
  func.func @_qkv_proj_kernel(%arg0: i32, %arg1: memref<256x128xf32, #tpu.memory_space<vmem>>, %arg2: memref<128x384xbf16, #tpu.memory_space<vmem>>, %arg3: memref<256x128xbf16, #tpu.memory_space<vmem>>, %arg4: memref<256x128xbf16, #tpu.memory_space<vmem>>, %arg5: memref<256x128xbf16, #tpu.memory_space<vmem>>) attributes {dimension_semantics = [#tpu.dimension_semantics<parallel>], iteration_bounds = array<i64: 2>, scalar_prefetch = 0 : i64, scratch_operands = 0 : i64, tpu.core_type = #tpu.core_type<tc>, window_params = [{transform_indices = @transform_0, window_bounds = array<i64: 256, 128>}, {pipeline_mode = #tpu.pipeline_mode<synchronous>, transform_indices = @transform_1, window_bounds = array<i64: 128, 384>}, {transform_indices = @transform_2, window_bounds = array<i64: 256, 128>}, {transform_indices = @transform_3, window_bounds = array<i64: 256, 128>}, {transform_indices = @transform_4, window_bounds = array<i64: 256, 128>}]} {
    %c0 = arith.constant 0 : index
    %c0_0 = arith.constant 0 : index
    %0 = vector.load %arg1[%c0, %c0_0] : memref<256x128xf32, #tpu.memory_space<vmem>>, vector<256x128xf32>
    %1 = arith.truncf %0 : vector<256x128xf32> to vector<256x128xbf16>
    %c0_1 = arith.constant 0 : index
    %c0_2 = arith.constant 0 : index
    %2 = vector.load %arg2[%c0_1, %c0_2] : memref<128x384xbf16, #tpu.memory_space<vmem>>, vector<128x384xbf16>
    %cst = arith.constant dense<0.000000e+00> : vector<256x384xf32>
    %3 = tpu.matmul %1, %2, %cst {dimension_numbers = #tpu.dot_dimension_numbers<[1], [0], [0], [1], [0, 0, 1, 1], [], []>} : vector<256x128xbf16>, vector<128x384xbf16>, vector<256x384xf32> -> vector<256x384xf32>
    %4 = vector.extract_strided_slice %3 {offsets = [0, 0], sizes = [256, 128], strides = [1, 1]} : vector<256x384xf32> to vector<256x128xf32>
    %5 = arith.truncf %4 : vector<256x128xf32> to vector<256x128xbf16>
    %c0_3 = arith.constant 0 : index
    %c0_4 = arith.constant 0 : index
    %6 = vector.load %arg3[%c0_3, %c0_4] : memref<256x128xbf16, #tpu.memory_space<vmem>>, vector<256x128xbf16>
    tpu.vector_store %arg3[%c0_3, %c0_4], %5 {strides = array<i32>} : memref<256x128xbf16, #tpu.memory_space<vmem>>, vector<256x128xbf16>,
    %7 = vector.extract_strided_slice %3 {offsets = [0, 128], sizes = [256, 128], strides = [1, 1]} : vector<256x384xf32> to vector<256x128xf32>
    %8 = arith.truncf %7 : vector<256x128xf32> to vector<256x128xbf16>
    %c0_5 = arith.constant 0 : index
    %c0_6 = arith.constant 0 : index
    %9 = vector.load %arg4[%c0_5, %c0_6] : memref<256x128xbf16, #tpu.memory_space<vmem>>, vector<256x128xbf16>
    tpu.vector_store %arg4[%c0_5, %c0_6], %8 {strides = array<i32>} : memref<256x128xbf16, #tpu.memory_space<vmem>>, vector<256x128xbf16>,
    %10 = vector.extract_strided_slice %3 {offsets = [0, 256], sizes = [256, 128], strides = [1, 1]} : vector<256x384xf32> to vector<256x128xf32>
    %11 = arith.truncf %10 : vector<256x128xf32> to vector<256x128xbf16>
    %c0_7 = arith.constant 0 : index
    %c0_8 = arith.constant 0 : index
    %12 = vector.load %arg5[%c0_7, %c0_8] : memref<256x128xbf16, #tpu.memory_space<vmem>>, vector<256x128xbf16>
    tpu.vector_store %arg5[%c0_7, %c0_8], %11 {strides = array<i32>} : memref<256x128xbf16, #tpu.memory_space<vmem>>, vector<256x128xbf16>,
    return
  }
  func.func @transform_0(%arg0: i32) -> (i32, i32) {
    %c0_i32 = arith.constant 0 : i32
    %c0_i32_0 = arith.constant 0 : i32
    return %arg0, %c0_i32 : i32, i32
  }
  func.func @transform_1(%arg0: i32) -> (i32, i32) {
    %c0_i32 = arith.constant 0 : i32
    %c0_i32_0 = arith.constant 0 : i32
    %c0_i32_1 = arith.constant 0 : i32
    return %c0_i32, %c0_i32_0 : i32, i32
  }
  func.func @transform_2(%arg0: i32) -> (i32, i32) {
    %c0_i32 = arith.constant 0 : i32
    %c0_i32_0 = arith.constant 0 : i32
    return %arg0, %c0_i32 : i32, i32
  }
  func.func @transform_3(%arg0: i32) -> (i32, i32) {
    %c0_i32 = arith.constant 0 : i32
    %c0_i32_0 = arith.constant 0 : i32
    return %arg0, %c0_i32 : i32, i32
  }
  func.func @transform_4(%arg0: i32) -> (i32, i32) {
    %c0_i32 = arith.constant 0 : i32
    %c0_i32_0 = arith.constant 0 : i32
    return %arg0, %c0_i32 : i32, i32
  }
}

</mosaic_0001>

<llo_original>
// kernel: tpu_custom_call.1
$region0: #{tpu_custom_call.1}
  #allocation0 [shape = 'u32[]', space=smem, size = 0x4, offset = 0x4, fixed_abs, tag = 'smem constant byte address 0x4 - core index']
  #allocation1 [shape = 'u32[144,128]{1,0:T(1,128)}', space=vmem, size = 0x12000, scoped, tag = 'internal scratch']
  %s0 = inlined_call_operand.hbm [shape: f32[512,128], index: 0, kind: input, shape index: {}]
  %s1 = inlined_call_operand.hbm [shape: bf16[128,384], index: 1, kind: input, shape index: {}]
  %s2 = inlined_call_operand.hbm [shape: bf16[512,128], index: 2, kind: output, shape index: {0}]
  %s3 = inlined_call_operand.hbm [shape: bf16[512,128], index: 3, kind: output, shape index: {1}]
  %s4 = inlined_call_operand.hbm [shape: bf16[512,128], index: 4, kind: output, shape index: {2}]
  %5 = xla_tuple %s2, %s3, %s4
  %s6 = sld [smem:[#allocation0]]
  $region65: #{tpu_custom_call.1} parent=0
    _
  %s8 = ssub.s32 1, %s6
  %s9 = scalar_select 0, %s8, %s6
  $region1: #{tpu_custom_call.1} parent=0
    #allocation2 [shape = 'u8[262144]{0}', space=vmem, size = 0x40000, scoped, tag = 'input window, operand 0']
    #allocation3 [shape = 's32[2]{0}', space=sflag, size = 0x8, scoped, tag = 'scoped memory for tpu_custom_call.1']
    #allocation4 [shape = 's32[2]{0}', space=sflag, size = 0x8, scoped, tag = 'scoped memory for tpu_custom_call.1']
    #allocation5 [shape = 'u8[98304]{0}', space=vmem, size = 0x18000, scoped, tag = 'input window, operand 1, single buffered']
    #allocation6 [shape = 's32[1]{0}', space=sflag, size = 0x4, scoped, tag = 'scoped memory for tpu_custom_call.1']
    #allocation7 [shape = 'u8[131072]{0}', space=vmem, size = 0x20000, scoped, tag = 'output window, operand 0']
    #allocation8 [shape = 'u8[131072]{0}', space=vmem, size = 0x20000, scoped, tag = 'output window, operand 1']
    #allocation9 [shape = 's32[2]{0}', space=sflag, size = 0x8, scoped, tag = 'scoped memory for tpu_custom_call.1']
    #allocation10 [shape = 'u8[131072]{0}', space=vmem, size = 0x20000, scoped, tag = 'output window, operand 2']
    %10 = vsyncpa [#allocation3], 0
    %s11 = scalar_lea.sflag [#allocation3], 1
    %12 = vsyncpa %s11, 0
    %13 = vsyncpa [#allocation6], 0
    %14 = vsyncpa [#allocation4], 0
    %s15 = scalar_lea.sflag [#allocation4], 1
    %16 = vsyncpa %s15, 0
    %17 = vsyncpa [#allocation9], 0
    %s18 = scalar_lea.sflag [#allocation9], 1
    %19 = vsyncpa %s18, 0
    loop: start=0, step=1, limit=4
    $region2: #{tpu_custom_call.1} parent=1 // loop_pre_header
      _
    $region3: #{tpu_custom_call.1} parent=1 // loop_header
      %s21 = sphi 0, %s25
      %p22 = scmp.ge.s32.totalorder %s21, 4
      %s31 = sphi 0, %s33
      %s34 = sphi 0, %s31
      %s35 = sphi 0, %s34
      %s51 = sphi 0, %s35
      %s55 = sphi 0, %s55
      %s57 = sphi 0, %s55
      %s58 = sphi 0, %s57
      %s72 = sphi 0, %s58
      %s78 = sphi 0, %s80
      %s81 = sphi 0, %s78
      %s82 = sphi 0, %s81
      %s98 = sphi 0, %s82
      %s104 = sphi 0, %s106
      %s107 = sphi 0, %s104
      %s108 = sphi 0, %s107
      %s124 = sphi 0, %s108
      %s130 = sphi 0, %s132
      %s133 = sphi 0, %s130
      %s134 = sphi 0, %s133
      %s150 = sphi 0, %s134
    $region4: #{tpu_custom_call.1} parent=1 // loop_header_branch
      %24 = sbr.rel (%p22) target = $region8
    $region5: #{tpu_custom_call.1} parent=1 // loop_body
      %s26 = ssub.s32 %s21, 1
      %s27 = ssub.s32 %s21, 2
      %s28 = sadd.s32 %s21, 1
      %s29 = ssub.s32 %s21, %s28
      %p30 = scmp.eq.s32.totalorder %s29, 0
      %s32 = sadd.s32 %s31, 1
      %s33 = scalar_select %p30, %s31, %s32
      %p36 = pneg %p30
      %p37 = scmp.eq.s32.totalorder %s21, 1
      %p38 = por %p36, %p37
      %p39 = scmp.ne.s32.totalorder %s31, %s34
      %p40 = scmp.eq.s32.totalorder %s21, 0
      %p41 = por %p39, %p40
      %p42 = scmp.ne.s32.totalorder %s31, %s34
      %p43 = scmp.eq.s32.totalorder %s26, 1
      %p44 = por %p42, %p43
      %p45 = scmp.ne.s32.totalorder %s34, %s35
      %p46 = scmp.eq.s32.totalorder %s26, 0
      %p47 = por %p45, %p46
      %p48 = scmp.ne.s32.totalorder %s34, %s35
      %p49 = scmp.eq.s32.totalorder %s27, 1
      %p50 = por %p48, %p49
      %p52 = scmp.ne.s32.totalorder %s35, %s51
      %p53 = scmp.eq.s32.totalorder %s27, 0
      %p54 = por %p52, %p53
      %s56 = sadd.s32 %s55, 1
      %p59 = scmp.eq.s32.totalorder %s21, 1
      %p60 = scmp.ne.s32.totalorder %s55, %s57
      %p61 = scmp.eq.s32.totalorder %s21, 0
      %p62 = por %p60, %p61
      %p63 = scmp.ne.s32.totalorder %s55, %s57
      %p64 = scmp.eq.s32.totalorder %s26, 1
      %p65 = por %p63, %p64
      %p66 = scmp.ne.s32.totalorder %s57, %s58
      %p67 = scmp.eq.s32.totalorder %s26, 0
      %p68 = por %p66, %p67
      %p69 = scmp.ne.s32.totalorder %s57, %s58
      %p70 = scmp.eq.s32.totalorder %s27, 1
      %p71 = por %p69, %p70
      %p73 = scmp.ne.s32.totalorder %s58, %s72
      %p74 = scmp.eq.s32.totalorder %s27, 0
      %p75 = por %p73, %p74
      %s76 = ssub.s32 %s21, %s28
      %p77 = scmp.eq.s32.totalorder %s76, 0
      %s79 = sadd.s32 %s78, 1
      %s80 = scalar_select %p77, %s78, %s79
      %p83 = pneg %p77
      %p84 = scmp.eq.s32.totalorder %s21, 1
      %p85 = por %p83, %p84
      %p86 = scmp.ne.s32.totalorder %s78, %s81
      %p87 = scmp.eq.s32.totalorder %s21, 0
      %p88 = por %p86, %p87
      %p89 = scmp.ne.s32.totalorder %s78, %s81
      %p90 = scmp.eq.s32.totalorder %s26, 1
      %p91 = por %p89, %p90
      %p92 = scmp.ne.s32.totalorder %s81, %s82
      %p93 = scmp.eq.s32.totalorder %s26, 0
      %p94 = por %p92, %p93
      %p95 = scmp.ne.s32.totalorder %s81, %s82
      %p96 = scmp.eq.s32.totalorder %s27, 1
      %p97 = por %p95, %p96
      %p99 = scmp.ne.s32.totalorder %s82, %s98
      %p100 = scmp.eq.s32.totalorder %s27, 0
      %p101 = por %p99, %p100
      %s102 = ssub.s32 %s21, %s28
      %p103 = scmp.eq.s32.totalorder %s102, 0
      %s105 = sadd.s32 %s104, 1
      %s106 = scalar_select %p103, %s104, %s105
      %p109 = pneg %p103
      %p110 = scmp.eq.s32.totalorder %s21, 1
      %p111 = por %p109, %p110
      %p112 = scmp.ne.s32.totalorder %s104, %s107
      %p113 = scmp.eq.s32.totalorder %s21, 0
      %p114 = por %p112, %p113
      %p115 = scmp.ne.s32.totalorder %s104, %s107
      %p116 = scmp.eq.s32.totalorder %s26, 1
      %p117 = por %p115, %p116
      %p118 = scmp.ne.s32.totalorder %s107, %s108
      %p119 = scmp.eq.s32.totalorder %s26, 0
      %p120 = por %p118, %p119
      %p121 = scmp.ne.s32.totalorder %s107, %s108
      %p122 = scmp.eq.s32.totalorder %s27, 1
      %p123 = por %p121, %p122
      %p125 = scmp.ne.s32.totalorder %s108, %s124
      %p126 = scmp.eq.s32.totalorder %s27, 0
      %p127 = por %p125, %p126
      %s128 = ssub.s32 %s21, %s28
      %p129 = scmp.eq.s32.totalorder %s128, 0
      %s131 = sadd.s32 %s130, 1
      %s132 = scalar_select %p129, %s130, %s131
      %p135 = pneg %p129
      %p136 = scmp.eq.s32.totalorder %s21, 1
      %p137 = por %p135, %p136
      %p138 = scmp.ne.s32.totalorder %s130, %s133
      %p139 = scmp.eq.s32.totalorder %s21, 0
      %p140 = por %p138, %p139
      %p141 = scmp.ne.s32.totalorder %s130, %s133
      %p142 = scmp.eq.s32.totalorder %s26, 1
      %p143 = por %p141, %p142
      %p144 = scmp.ne.s32.totalorder %s133, %s134
      %p145 = scmp.eq.s32.totalorder %s26, 0
      %p146 = por %p144, %p145
      %p147 = scmp.ne.s32.totalorder %s133, %s134
      %p148 = scmp.eq.s32.totalorder %s27, 1
      %p149 = por %p147, %p148
      %p151 = scmp.ne.s32.totalorder %s134, %s150
      %p152 = scmp.eq.s32.totalorder %s27, 0
      %p153 = por %p151, %p152
      %p154 = scmp.le.s32.totalorder 1, %s21
      %p155 = scmp.lt.s32.totalorder %s21, 3
      %p156 = pnand %p154, %p155
      %p157 = pneg %p156
      // Predicated region
      $region9: #{tpu_custom_call.1} parent=5 // pred_check
        _
      $region10: #{tpu_custom_call.1} parent=5 // pred_check_branch
        %159 = sbr.rel (%p156) target = $region12
      $region11: #{tpu_custom_call.1} parent=5 // pred_region
        %s160 = ssub.s32 %s21, 1
        // Predicated region
        $region13: #{tpu_custom_call.1} parent=11 // pred_check
          %p161 = pneg %p68
        $region14: #{tpu_custom_call.1} parent=11 // pred_check_branch
          %163 = sbr.rel (%p161) target = $region16
        $region15: #{tpu_custom_call.1} parent=11 // pred_region
          %s165 = ssub.s32 3072, 3072
          %166 = vsyncadd [#allocation6], %s165
          %s167 = sshll.u32 [#allocation5], 4
          %s168 = int_to_ptr.vmem [resolvable:$true] %s167
          %173 = dma.hbm_to_vmem [thread:$0]  %s1, 3072, %s168, [#allocation6], 192, 192, 12
        $region16: #{tpu_custom_call.1} parent=11 // pred_fallthru
          _
      $region12: #{tpu_custom_call.1} parent=5 // pred_fallthru
        _
      %p174 = scmp.lt.s32.totalorder %s21, 2
      // Predicated region
      $region17: #{tpu_custom_call.1} parent=5 // pred_check
        %p175 = pneg %p174
      $region18: #{tpu_custom_call.1} parent=5 // pred_check_branch
        %177 = sbr.rel (%p175) target = $region20
      $region19: #{tpu_custom_call.1} parent=5 // pred_region
        // Predicated region
        $region21: #{tpu_custom_call.1} parent=19 // pred_check
          %p178 = pneg %p41
        $region22: #{tpu_custom_call.1} parent=19 // pred_check_branch
          %180 = sbr.rel (%p178) target = $region24
        $region23: #{tpu_custom_call.1} parent=19 // pred_region
          %s181 = sand.u32 %s31, 1
          %s182 = scalar_lea.sflag [#allocation3], %s181
          %s183 = sand.u32 %s31, 1
          %s184 = smul.addr %s183, 256
          %s185 = scalar_lea.vmem [#allocation2], %s184
          %s186 = smul.u32 32, %s21
          %s188 = ssub.s32 4096, 4096
          %189 = vsyncadd %s182, %s188
          %s190 = smul.addr %s186, 128
          %s191 = scalar_lea.hbm %s0, %s190
          %s192 = sshll.u32 %s185, 4
          %s193 = int_to_ptr.vmem [resolvable:$true] %s192
          %198 = dma.hbm_to_vmem [thread:$0]  %s191, 4096, %s193, %s182, 128, 128, 8
        $region24: #{tpu_custom_call.1} parent=19 // pred_fallthru
          _
      $region20: #{tpu_custom_call.1} parent=5 // pred_fallthru
        _
      %p199 = scmp.le.s32.totalorder 1, %s21
      %p200 = scmp.lt.s32.totalorder %s21, 3
      %p201 = pnand %p199, %p200
      %p202 = pneg %p201
      // Predicated region
      $region25: #{tpu_custom_call.1} parent=5 // pred_check
        _
      $region26: #{tpu_custom_call.1} parent=5 // pred_check_branch
        %204 = sbr.rel (%p201) target = $region28
      $region27: #{tpu_custom_call.1} parent=5 // pred_region
        %s205 = ssub.s32 %s21, 1
        %s206 = sand.u32 %s34, 1
        %s207 = scalar_lea.sflag [#allocation3], %s206
        %s208 = sand.u32 %s34, 1
        %s209 = smul.addr %s208, 256
        %s210 = scalar_lea.vmem [#allocation2], %s209
        // Predicated region
        $region29: #{tpu_custom_call.1} parent=27 // pred_check
          %p211 = pneg %p47
        $region30: #{tpu_custom_call.1} parent=27 // pred_check_branch
          %213 = sbr.rel (%p211) target = $region32
        $region31: #{tpu_custom_call.1} parent=27 // pred_region
          %214 = dma.done %s207, 4096
        $region32: #{tpu_custom_call.1} parent=27 // pred_fallthru
          _
        // Predicated region
        $region33: #{tpu_custom_call.1} parent=27 // pred_check
          %p215 = pneg %p68
        $region34: #{tpu_custom_call.1} parent=27 // pred_check_branch
          %217 = sbr.rel (%p215) target = $region36
        $region35: #{tpu_custom_call.1} parent=27 // pred_region
          %218 = dma.done [#allocation6], 3072
        $region36: #{tpu_custom_call.1} parent=27 // pred_fallthru
          _
        %s219 = sand.u32 %s34, 1
        %s220 = scalar_lea.sflag [#allocation3], %s219
        %s221 = sand.u32 %s34, 1
        %s222 = smul.addr %s221, 256
        %s223 = scalar_lea.vmem [#allocation2], %s222
        %p224 = pneg %p47
        %p225 = pneg %p44
        %p226 = pneg %p68
        %p227 = pneg %p65
        %p228 = pneg %p94
        %p229 = pneg %p91
        %s230 = sand.u32 %s81, 1
        %s231 = scalar_lea.sflag [#allocation4], %s230
        %s232 = sand.u32 %s81, 1
        %s233 = smul.addr %s232, 128
        %s234 = scalar_lea.vmem [#allocation7], %s233
        %p235 = pneg %p120
        %p236 = pneg %p117
        %s237 = sand.u32 %s26, 1
        %s238 = scalar_lea.sflag [#allocation9], %s237
        %s239 = sand.u32 %s107, 1
        %s240 = smul.addr %s239, 128
        %s241 = scalar_lea.vmem [#allocation8], %s240
        %p242 = pneg %p146
        %p243 = pneg %p143
        %s244 = sand.u32 %s26, 1
        %s245 = scalar_lea.sflag [#allocation9], %s244
        %s246 = sand.u32 %s133, 1
        %s247 = smul.addr %s246, 128
        %s248 = scalar_lea.vmem [#allocation10], %s247
        %s249 = smul.u32 32, %s26
        %s250 = smul.u32 32, %s26
        %s251 = smul.u32 32, %s26
        %s252 = smul.u32 32, %s26
        %v254 = vld [vmem:[%s210] sm:$0xff]
        %v255 = vld [vmem:[%s210 + $0x8] sm:$0xff]
        %v256 = vld [vmem:[%s210 + $0x10] sm:$0xff]
        %v257 = vld [vmem:[%s210 + $0x18] sm:$0xff]
        %v258 = vld [vmem:[%s210 + $0x20] sm:$0xff]
        %v259 = vld [vmem:[%s210 + $0x28] sm:$0xff]
        %v260 = vld [vmem:[%s210 + $0x30] sm:$0xff]
        %v261 = vld [vmem:[%s210 + $0x38] sm:$0xff]
        %v262 = vld [vmem:[%s210 + $0x40] sm:$0xff]
        %v263 = vld [vmem:[%s210 + $0x48] sm:$0xff]
        %v264 = vld [vmem:[%s210 + $0x50] sm:$0xff]
        %v265 = vld [vmem:[%s210 + $0x58] sm:$0xff]
        %v266 = vld [vmem:[%s210 + $0x60] sm:$0xff]
        %v267 = vld [vmem:[%s210 + $0x68] sm:$0xff]
        %v268 = vld [vmem:[%s210 + $0x70] sm:$0xff]
        %v269 = vld [vmem:[%s210 + $0x78] sm:$0xff]
        %v270 = vld [vmem:[%s210 + $0x80] sm:$0xff]
        %v271 = vld [vmem:[%s210 + $0x88] sm:$0xff]
        %v272 = vld [vmem:[%s210 + $0x90] sm:$0xff]
        %v273 = vld [vmem:[%s210 + $0x98] sm:$0xff]
        %v274 = vld [vmem:[%s210 + $0xa0] sm:$0xff]
        %v275 = vld [vmem:[%s210 + $0xa8] sm:$0xff]
        %v276 = vld [vmem:[%s210 + $0xb0] sm:$0xff]
        %v277 = vld [vmem:[%s210 + $0xb8] sm:$0xff]
        %v278 = vld [vmem:[%s210 + $0xc0] sm:$0xff]
        %v279 = vld [vmem:[%s210 + $0xc8] sm:$0xff]
        %v280 = vld [vmem:[%s210 + $0xd0] sm:$0xff]
        %v281 = vld [vmem:[%s210 + $0xd8] sm:$0xff]
        %v282 = vld [vmem:[%s210 + $0xe0] sm:$0xff]
        %v283 = vld [vmem:[%s210 + $0xe8] sm:$0xff]
        %v284 = vld [vmem:[%s210 + $0xf0] sm:$0xff]
        %v285 = vld [vmem:[%s210 + $0xf8] sm:$0xff]
        %v286 = vpack.c.bf16 %v255, %v254
        %v287 = vpack.c.bf16 %v257, %v256
        %v288 = vpack.c.bf16 %v259, %v258
        %v289 = vpack.c.bf16 %v261, %v260
        %v290 = vpack.c.bf16 %v263, %v262
        %v291 = vpack.c.bf16 %v265, %v264
        %v292 = vpack.c.bf16 %v267, %v266
        %v293 = vpack.c.bf16 %v269, %v268
        %v294 = vpack.c.bf16 %v271, %v270
        %v295 = vpack.c.bf16 %v273, %v272
        %v296 = vpack.c.bf16 %v275, %v274
        %v297 = vpack.c.bf16 %v277, %v276
        %v298 = vpack.c.bf16 %v279, %v278
        %v299 = vpack.c.bf16 %v281, %v280
        %v300 = vpack.c.bf16 %v283, %v282
        %v301 = vpack.c.bf16 %v285, %v284
        %v302 = vld [vmem:[#allocation5] sm:$0xff]
        %v303 = vld [vmem:[#allocation5 + $0x8] sm:$0xf]
        %v304 = vld [vmem:[#allocation5 + $0xc] sm:$0xff]
        %v305 = vld [vmem:[#allocation5 + $0x14] sm:$0xf]
        %v306 = vld [vmem:[#allocation5 + $0x18] sm:$0xff]
        %v307 = vld [vmem:[#allocation5 + $0x20] sm:$0xf]
        %v308 = vld [vmem:[#allocation5 + $0x24] sm:$0xff]
        %v309 = vld [vmem:[#allocation5 + $0x2c] sm:$0xf]
        %v310 = vld [vmem:[#allocation5 + $0x30] sm:$0xff]
        %v311 = vld [vmem:[#allocation5 + $0x38] sm:$0xf]
        %v312 = vld [vmem:[#allocation5 + $0x3c] sm:$0xff]
        %v313 = vld [vmem:[#allocation5 + $0x44] sm:$0xf]
        %v314 = vld [vmem:[#allocation5 + $0x48] sm:$0xff]
        %v315 = vld [vmem:[#allocation5 + $0x50] sm:$0xf]
        %v316 = vld [vmem:[#allocation5 + $0x54] sm:$0xff]
        %v317 = vld [vmem:[#allocation5 + $0x5c] sm:$0xf]
        %v318 = vld [vmem:[#allocation5 + $0x60] sm:$0xff]
        %v319 = vld [vmem:[#allocation5 + $0x68] sm:$0xf]
        %v320 = vld [vmem:[#allocation5 + $0x6c] sm:$0xff]
        %v321 = vld [vmem:[#allocation5 + $0x74] sm:$0xf]
        %v322 = vld [vmem:[#allocation5 + $0x78] sm:$0xff]
        %v323 = vld [vmem:[#allocation5 + $0x80] sm:$0xf]
        %v324 = vld [vmem:[#allocation5 + $0x84] sm:$0xff]
        %v325 = vld [vmem:[#allocation5 + $0x8c] sm:$0xf]
        %v326 = vld [vmem:[#allocation5 + $0x90] sm:$0xff]
        %v327 = vld [vmem:[#allocation5 + $0x98] sm:$0xf]
        %v328 = vld [vmem:[#allocation5 + $0x9c] sm:$0xff]
        %v329 = vld [vmem:[#allocation5 + $0xa4] sm:$0xf]
        %v330 = vld [vmem:[#allocation5 + $0xa8] sm:$0xff]
        %v331 = vld [vmem:[#allocation5 + $0xb0] sm:$0xf]
        %v332 = vld [vmem:[#allocation5 + $0xb4] sm:$0xff]
        %v333 = vld [vmem:[#allocation5 + $0xbc] sm:$0xf]
        %v366 = vunpack.c.l.b16 %v302
        %v367 = vunpack.c.h.b16 %v302
        %v368 = vunpack.c.l.b16 %v303
        %v369 = vunpack.c.l.b16 %v304
        %v370 = vunpack.c.h.b16 %v304
        %v371 = vunpack.c.l.b16 %v305
        %v372 = vunpack.c.l.b16 %v306
        %v373 = vunpack.c.h.b16 %v306
        %v374 = vunpack.c.l.b16 %v307
        %v375 = vunpack.c.l.b16 %v308
        %v376 = vunpack.c.h.b16 %v308
        %v377 = vunpack.c.l.b16 %v309
        %v378 = vunpack.c.l.b16 %v310
        %v379 = vunpack.c.h.b16 %v310
        %v380 = vunpack.c.l.b16 %v311
        %v381 = vunpack.c.l.b16 %v312
        %v382 = vunpack.c.h.b16 %v312
        %v383 = vunpack.c.l.b16 %v313
        %v384 = vunpack.c.l.b16 %v314
        %v385 = vunpack.c.h.b16 %v314
        %v386 = vunpack.c.l.b16 %v315
        %v387 = vunpack.c.l.b16 %v316
        %v388 = vunpack.c.h.b16 %v316
        %v389 = vunpack.c.l.b16 %v317
        %v390 = vunpack.c.l.b16 %v318
        %v391 = vunpack.c.h.b16 %v318
        %v392 = vunpack.c.l.b16 %v319
        %v393 = vunpack.c.l.b16 %v320
        %v394 = vunpack.c.h.b16 %v320
        %v395 = vunpack.c.l.b16 %v321
        %v396 = vunpack.c.l.b16 %v322
        %v397 = vunpack.c.h.b16 %v322
        %v398 = vunpack.c.l.b16 %v323
        %v399 = vunpack.c.l.b16 %v324
        %v400 = vunpack.c.h.b16 %v324
        %v401 = vunpack.c.l.b16 %v325
        %v402 = vunpack.c.l.b16 %v326
        %v403 = vunpack.c.h.b16 %v326
        %v404 = vunpack.c.l.b16 %v327
        %v405 = vunpack.c.l.b16 %v328
        %v406 = vunpack.c.h.b16 %v328
        %v407 = vunpack.c.l.b16 %v329
        %v408 = vunpack.c.l.b16 %v330
        %v409 = vunpack.c.h.b16 %v330
        %v410 = vunpack.c.l.b16 %v331
        %v411 = vunpack.c.l.b16 %v332
        %v412 = vunpack.c.h.b16 %v332
        %v413 = vunpack.c.l.b16 %v333
        %v414 = vpack.c.b16 %v369, %v366
        %v415 = vpack.c.b16 %v370, %v367
        %v416 = vpack.c.b16 %v371, %v368
        %v417 = vpack.c.b16 %v375, %v372
        %v418 = vpack.c.b16 %v376, %v373
        %v419 = vpack.c.b16 %v377, %v374
        %v420 = vpack.c.b16 %v381, %v378
        %v421 = vpack.c.b16 %v382, %v379
        %v422 = vpack.c.b16 %v383, %v380
        %v423 = vpack.c.b16 %v387, %v384
        %v424 = vpack.c.b16 %v388, %v385
        %v425 = vpack.c.b16 %v389, %v386
        %v426 = vpack.c.b16 %v393, %v390
        %v427 = vpack.c.b16 %v394, %v391
        %v428 = vpack.c.b16 %v395, %v392
        %v429 = vpack.c.b16 %v399, %v396
        %v430 = vpack.c.b16 %v400, %v397
        %v431 = vpack.c.b16 %v401, %v398
        %v432 = vpack.c.b16 %v405, %v402
        %v433 = vpack.c.b16 %v406, %v403
        %v434 = vpack.c.b16 %v407, %v404
        %v435 = vpack.c.b16 %v411, %v408
        %v436 = vpack.c.b16 %v412, %v409
        %v437 = vpack.c.b16 %v413, %v410
        %462 = vmatprep.subr.bf16.mxu0 %v415
        %463 = vmatpush1.bf16.msra.mxu0 %v414
        %464 = vmatprep.subr.bf16.mxu0 %v418
        %465 = vmatpush1.bf16.msra.mxu0 %v417
        %466 = vmatprep.subr.bf16.mxu0 %v421
        %467 = vmatpush1.bf16.msra.mxu0 %v420
        %468 = vmatprep.subr.bf16.mxu0 %v424
        %469 = vmatpush1.bf16.msra.mxu0 %v423
        %470 = vmatprep.subr.bf16.mxu0 %v427
        %471 = vmatpush1.bf16.msra.mxu0 %v426
        %472 = vmatprep.subr.bf16.mxu0 %v430
        %473 = vmatpush1.bf16.msra.mxu0 %v429
        %474 = vmatprep.subr.bf16.mxu0 %v433
        %475 = vmatpush1.bf16.msra.mxu0 %v432
        %476 = vmatprep.subr.bf16.mxu0 %v436
        %477 = vmatpush1.bf16.msra.mxu0 %v435
        %478 = vmatprep.subr.bf16.mxu0 0
        %479 = vmatpush1.bf16.msra.mxu0 0
        %480 = vmatprep.subr.bf16.mxu0 0
        %481 = vmatpush1.bf16.msra.mxu0 0
        %482 = vmatprep.subr.bf16.mxu0 0
        %483 = vmatpush1.bf16.msra.mxu0 0
        %484 = vmatprep.subr.bf16.mxu0 0
        %485 = vmatpush1.bf16.msra.mxu0 0
        %486 = vmatprep.subr.bf16.mxu0 0
        %487 = vmatpush1.bf16.msra.mxu0 0
        %488 = vmatprep.subr.bf16.mxu0 0
        %489 = vmatpush1.bf16.msra.mxu0 0
        %490 = vmatprep.subr.bf16.mxu0 0
        %491 = vmatpush1.bf16.msra.mxu0 0
        %492 = vmatprep.subr.bf16.mxu0 0
        %493 = vmatpush1.bf16.msra.mxu0 0
        %494 = vmatprep.mubr.bf16.mxu0 0
        %495 = vmatmul.mubr.bf16.gmra.mrb[0].mxu0 %v286
        %v496 = vpop.f32.mrb[0].mxu0
        %v497 = vadd.f32 0.0, %v496
        %v498 = vpop.f32.mrb[0].mxu0
        %v499 = vadd.f32 0.0, %v498
        %v500 = vpop.f32.mrb[0].mxu0
        %v501 = vadd.f32 0.0, %v500
        %v502 = vpop.f32.mrb[0].mxu0
        %v503 = vadd.f32 0.0, %v502
        %504 = vmatprep.mubr.bf16.mxu0 0
        %505 = vmatmul.mubr.bf16.gmra.mrb[0].mxu0 %v287
        %v506 = vpop.f32.mrb[0].mxu0
        %v507 = vadd.f32 0.0, %v506
        %v508 = vpop.f32.mrb[0].mxu0
        %v509 = vadd.f32 0.0, %v508
        %v510 = vpop.f32.mrb[0].mxu0
        %v511 = vadd.f32 0.0, %v510
        %v512 = vpop.f32.mrb[0].mxu0
        %v513 = vadd.f32 0.0, %v512
        %514 = vmatprep.mubr.bf16.mxu0 0
        %515 = vmatmul.mubr.bf16.gmra.mrb[0].mxu0 %v288
        %v516 = vpop.f32.mrb[0].mxu0
        %v517 = vadd.f32 0.0, %v516
        %v518 = vpop.f32.mrb[0].mxu0
        %v519 = vadd.f32 0.0, %v518
        %v520 = vpop.f32.mrb[0].mxu0
        %v521 = vadd.f32 0.0, %v520
        %v522 = vpop.f32.mrb[0].mxu0
        %v523 = vadd.f32 0.0, %v522
        %524 = vmatprep.mubr.bf16.mxu0 0
        %525 = vmatmul.mubr.bf16.gmra.mrb[0].mxu0 %v289
        %v526 = vpop.f32.mrb[0].mxu0
        %v527 = vadd.f32 0.0, %v526
        %v528 = vpop.f32.mrb[0].mxu0
        %v529 = vadd.f32 0.0, %v528
        %v530 = vpop.f32.mrb[0].mxu0
        %v531 = vadd.f32 0.0, %v530
        %v532 = vpop.f32.mrb[0].mxu0
        %v533 = vadd.f32 0.0, %v532
        %534 = vmatprep.mubr.bf16.mxu0 0
        %535 = vmatmul.mubr.bf16.gmra.mrb[0].mxu0 %v290
        %v536 = vpop.f32.mrb[0].mxu0
        %v537 = vadd.f32 0.0, %v536
        %v538 = vpop.f32.mrb[0].mxu0
        %v539 = vadd.f32 0.0, %v538
        %v540 = vpop.f32.mrb[0].mxu0
        %v541 = vadd.f32 0.0, %v540
        %v542 = vpop.f32.mrb[0].mxu0
        %v543 = vadd.f32 0.0, %v542
        %544 = vmatprep.mubr.bf16.mxu0 0
        %545 = vmatmul.mubr.bf16.gmra.mrb[0].mxu0 %v291
        %v546 = vpop.f32.mrb[0].mxu0
        %v547 = vadd.f32 0.0, %v546
        %v548 = vpop.f32.mrb[0].mxu0
        %v549 = vadd.f32 0.0, %v548
        %v550 = vpop.f32.mrb[0].mxu0
        %v551 = vadd.f32 0.0, %v550
        %v552 = vpop.f32.mrb[0].mxu0
        %v553 = vadd.f32 0.0, %v552
        %554 = vmatprep.mubr.bf16.mxu0 0
        %555 = vmatmul.mubr.bf16.gmra.mrb[0].mxu0 %v292
        %v556 = vpop.f32.mrb[0].mxu0
        %v557 = vadd.f32 0.0, %v556
        %v558 = vpop.f32.mrb[0].mxu0
        %v559 = vadd.f32 0.0, %v558
        %v560 = vpop.f32.mrb[0].mxu0
        %v561 = vadd.f32 0.0, %v560
        %v562 = vpop.f32.mrb[0].mxu0
        %v563 = vadd.f32 0.0, %v562
        %564 = vmatprep.mubr.bf16.mxu0 0
        %565 = vmatmul.mubr.bf16.gmra.mrb[0].mxu0 %v293
        %v566 = vpop.f32.mrb[0].mxu0
        %v567 = vadd.f32 0.0, %v566
        %v568 = vpop.f32.mrb[0].mxu0
        %v569 = vadd.f32 0.0, %v568
        %v570 = vpop.f32.mrb[0].mxu0
        %v571 = vadd.f32 0.0, %v570
        %v572 = vpop.f32.mrb[0].mxu0
        %v573 = vadd.f32 0.0, %v572
        %574 = vmatprep.mubr.bf16.mxu0 0
        %575 = vmatmul.mubr.bf16.gmra.mrb[0].mxu0 %v294
        %v576 = vpop.f32.mrb[0].mxu0
        %v577 = vadd.f32 0.0, %v576
        %v578 = vpop.f32.mrb[0].mxu0
        %v579 = vadd.f32 0.0, %v578
        %v580 = vpop.f32.mrb[0].mxu0
        %v581 = vadd.f32 0.0, %v580
        %v582 = vpop.f32.mrb[0].mxu0
        %v583 = vadd.f32 0.0, %v582
        %584 = vmatprep.mubr.bf16.mxu0 0
        %585 = vmatmul.mubr.bf16.gmra.mrb[0].mxu0 %v295
        %v586 = vpop.f32.mrb[0].mxu0
        %v587 = vadd.f32 0.0, %v586
        %v588 = vpop.f32.mrb[0].mxu0
        %v589 = vadd.f32 0.0, %v588
        %v590 = vpop.f32.mrb[0].mxu0
        %v591 = vadd.f32 0.0, %v590
        %v592 = vpop.f32.mrb[0].mxu0
        %v593 = vadd.f32 0.0, %v592
        %594 = vmatprep.mubr.bf16.mxu0 0
        %595 = vmatmul.mubr.bf16.gmra.mrb[0].mxu0 %v296
        %v596 = vpop.f32.mrb[0].mxu0
        %v597 = vadd.f32 0.0, %v596
        %v598 = vpop.f32.mrb[0].mxu0
        %v599 = vadd.f32 0.0, %v598
        %v600 = vpop.f32.mrb[0].mxu0
        %v601 = vadd.f32 0.0, %v600
        %v602 = vpop.f32.mrb[0].mxu0
        %v603 = vadd.f32 0.0, %v602
        %604 = vmatprep.mubr.bf16.mxu0 0
        %605 = vmatmul.mubr.bf16.gmra.mrb[0].mxu0 %v297
        %v606 = vpop.f32.mrb[0].mxu0
        %v607 = vadd.f32 0.0, %v606
        %v608 = vpop.f32.mrb[0].mxu0
        %v609 = vadd.f32 0.0, %v608
        %v610 = vpop.f32.mrb[0].mxu0
        %v611 = vadd.f32 0.0, %v610
        %v612 = vpop.f32.mrb[0].mxu0
        %v613 = vadd.f32 0.0, %v612
        %614 = vmatprep.mubr.bf16.mxu0 0
        %615 = vmatmul.mubr.bf16.gmra.mrb[0].mxu0 %v298
        %v616 = vpop.f32.mrb[0].mxu0
        %v617 = vadd.f32 0.0, %v616
        %v618 = vpop.f32.mrb[0].mxu0
        %v619 = vadd.f32 0.0, %v618
        %v620 = vpop.f32.mrb[0].mxu0
        %v621 = vadd.f32 0.0, %v620
        %v622 = vpop.f32.mrb[0].mxu0
        %v623 = vadd.f32 0.0, %v622
        %624 = vmatprep.mubr.bf16.mxu0 0
        %625 = vmatmul.mubr.bf16.gmra.mrb[0].mxu0 %v299
        %v626 = vpop.f32.mrb[0].mxu0
        %v627 = vadd.f32 0.0, %v626
        %v628 = vpop.f32.mrb[0].mxu0
        %v629 = vadd.f32 0.0, %v628
        %v630 = vpop.f32.mrb[0].mxu0
        %v631 = vadd.f32 0.0, %v630
        %v632 = vpop.f32.mrb[0].mxu0
        %v633 = vadd.f32 0.0, %v632
        %634 = vmatprep.mubr.bf16.mxu0 0
        %635 = vmatmul.mubr.bf16.gmra.mrb[0].mxu0 %v300
        %v636 = vpop.f32.mrb[0].mxu0
        %v637 = vadd.f32 0.0, %v636
        %v638 = vpop.f32.mrb[0].mxu0
        %v639 = vadd.f32 0.0, %v638
        %v640 = vpop.f32.mrb[0].mxu0
        %v641 = vadd.f32 0.0, %v640
        %v642 = vpop.f32.mrb[0].mxu0
        %v643 = vadd.f32 0.0, %v642
        %644 = vmatprep.mubr.bf16.mxu0 0
        %645 = vmatmul.mubr.bf16.gmra.mrb[0].mxu0 %v301
        %v646 = vpop.f32.mrb[0].mxu0
        %v647 = vadd.f32 0.0, %v646
        %v648 = vpop.f32.mrb[0].mxu0
        %v649 = vadd.f32 0.0, %v648
        %v650 = vpop.f32.mrb[0].mxu0
        %v651 = vadd.f32 0.0, %v650
        %v652 = vpop.f32.mrb[0].mxu0
        %v653 = vadd.f32 0.0, %v652
        %654 = vdwg.mxu0
        %655 = vmatprep.subr.bf16.mxu0 0
        %656 = vmatpush1.bf16.msra.mxu0 %v416
        %657 = vmatprep.subr.bf16.mxu0 0
        %658 = vmatpush1.bf16.msra.mxu0 %v419
        %659 = vmatprep.subr.bf16.mxu0 0
        %660 = vmatpush1.bf16.msra.mxu0 %v422
        %661 = vmatprep.subr.bf16.mxu0 0
        %662 = vmatpush1.bf16.msra.mxu0 %v425
        %663 = vmatprep.subr.bf16.mxu0 0
        %664 = vmatpush1.bf16.msra.mxu0 %v428
        %665 = vmatprep.subr.bf16.mxu0 0
        %666 = vmatpush1.bf16.msra.mxu0 %v431
        %667 = vmatprep.subr.bf16.mxu0 0
        %668 = vmatpush1.bf16.msra.mxu0 %v434
        %669 = vmatprep.subr.bf16.mxu0 0
        %670 = vmatpush1.bf16.msra.mxu0 %v437
        %671 = vmatprep.subr.bf16.mxu0 0
        %672 = vmatpush1.bf16.msra.mxu0 0
        %673 = vmatprep.subr.bf16.mxu0 0
        %674 = vmatpush1.bf16.msra.mxu0 0
        %675 = vmatprep.subr.bf16.mxu0 0
        %676 = vmatpush1.bf16.msra.mxu0 0
        %677 = vmatprep.subr.bf16.mxu0 0
        %678 = vmatpush1.bf16.msra.mxu0 0
        %679 = vmatprep.subr.bf16.mxu0 0
        %680 = vmatpush1.bf16.msra.mxu0 0
        %681 = vmatprep.subr.bf16.mxu0 0
        %682 = vmatpush1.bf16.msra.mxu0 0
        %683 = vmatprep.subr.bf16.mxu0 0
        %684 = vmatpush1.bf16.msra.mxu0 0
        %685 = vmatprep.subr.bf16.mxu0 0
        %686 = vmatpush1.bf16.msra.mxu0 0
        %687 = vmatprep.mubr.bf16.mxu0 0
        %688 = vmatmul.mubr.bf16.gmra.mrb[0].mxu0 %v286
        %v689 = vpop.f32.mrb[0].mxu0
        %v690 = vadd.f32 0.0, %v689
        %v691 = vpop.f32.mrb[0].mxu0
        %v692 = vpop.f32.mrb[0].mxu0
        %v693 = vadd.f32 0.0, %v692
        %v694 = vpop.f32.mrb[0].mxu0
        %695 = vmatprep.mubr.bf16.mxu0 0
        %696 = vmatmul.mubr.bf16.gmra.mrb[0].mxu0 %v287
        %v697 = vpop.f32.mrb[0].mxu0
        %v698 = vadd.f32 0.0, %v697
        %v699 = vpop.f32.mrb[0].mxu0
        %v700 = vpop.f32.mrb[0].mxu0
        %v701 = vadd.f32 0.0, %v700
        %v702 = vpop.f32.mrb[0].mxu0
        %703 = vmatprep.mubr.bf16.mxu0 0
        %704 = vmatmul.mubr.bf16.gmra.mrb[0].mxu0 %v288
        %v705 = vpop.f32.mrb[0].mxu0
        %v706 = vadd.f32 0.0, %v705
        %v707 = vpop.f32.mrb[0].mxu0
        %v708 = vpop.f32.mrb[0].mxu0
        %v709 = vadd.f32 0.0, %v708
        %v710 = vpop.f32.mrb[0].mxu0
        %711 = vmatprep.mubr.bf16.mxu0 0
        %712 = vmatmul.mubr.bf16.gmra.mrb[0].mxu0 %v289
        %v713 = vpop.f32.mrb[0].mxu0
        %v714 = vadd.f32 0.0, %v713
        %v715 = vpop.f32.mrb[0].mxu0
        %v716 = vpop.f32.mrb[0].mxu0
        %v717 = vadd.f32 0.0, %v716
        %v718 = vpop.f32.mrb[0].mxu0
        %719 = vmatprep.mubr.bf16.mxu0 0
        %720 = vmatmul.mubr.bf16.gmra.mrb[0].mxu0 %v290
        %v721 = vpop.f32.mrb[0].mxu0
        %v722 = vadd.f32 0.0, %v721
        %v723 = vpop.f32.mrb[0].mxu0
        %v724 = vpop.f32.mrb[0].mxu0
        %v725 = vadd.f32 0.0, %v724
        %v726 = vpop.f32.mrb[0].mxu0
        %727 = vmatprep.mubr.bf16.mxu0 0
        %728 = vmatmul.mubr.bf16.gmra.mrb[0].mxu0 %v291
        %v729 = vpop.f32.mrb[0].mxu0
        %v730 = vadd.f32 0.0, %v729
        %v731 = vpop.f32.mrb[0].mxu0
        %v732 = vpop.f32.mrb[0].mxu0
        %v733 = vadd.f32 0.0, %v732
        %v734 = vpop.f32.mrb[0].mxu0
        %735 = vmatprep.mubr.bf16.mxu0 0
        %736 = vmatmul.mubr.bf16.gmra.mrb[0].mxu0 %v292
        %v737 = vpop.f32.mrb[0].mxu0
        %v738 = vadd.f32 0.0, %v737
        %v739 = vpop.f32.mrb[0].mxu0
        %v740 = vpop.f32.mrb[0].mxu0
        %v741 = vadd.f32 0.0, %v740
        %v742 = vpop.f32.mrb[0].mxu0
        %743 = vmatprep.mubr.bf16.mxu0 0
        %744 = vmatmul.mubr.bf16.gmra.mrb[0].mxu0 %v293
        %v745 = vpop.f32.mrb[0].mxu0
        %v746 = vadd.f32 0.0, %v745
        %v747 = vpop.f32.mrb[0].mxu0
        %v748 = vpop.f32.mrb[0].mxu0
        %v749 = vadd.f32 0.0, %v748
        %v750 = vpop.f32.mrb[0].mxu0
        %751 = vmatprep.mubr.bf16.mxu0 0
        %752 = vmatmul.mubr.bf16.gmra.mrb[0].mxu0 %v294
        %v753 = vpop.f32.mrb[0].mxu0
        %v754 = vadd.f32 0.0, %v753
        %v755 = vpop.f32.mrb[0].mxu0
        %v756 = vpop.f32.mrb[0].mxu0
        %v757 = vadd.f32 0.0, %v756
        %v758 = vpop.f32.mrb[0].mxu0
        %759 = vmatprep.mubr.bf16.mxu0 0
        %760 = vmatmul.mubr.bf16.gmra.mrb[0].mxu0 %v295
        %v761 = vpop.f32.mrb[0].mxu0
        %v762 = vadd.f32 0.0, %v761
        %v763 = vpop.f32.mrb[0].mxu0
        %v764 = vpop.f32.mrb[0].mxu0
        %v765 = vadd.f32 0.0, %v764
        %v766 = vpop.f32.mrb[0].mxu0
        %767 = vmatprep.mubr.bf16.mxu0 0
        %768 = vmatmul.mubr.bf16.gmra.mrb[0].mxu0 %v296
        %v769 = vpop.f32.mrb[0].mxu0
        %v770 = vadd.f32 0.0, %v769
        %v771 = vpop.f32.mrb[0].mxu0
        %v772 = vpop.f32.mrb[0].mxu0
        %v773 = vadd.f32 0.0, %v772
        %v774 = vpop.f32.mrb[0].mxu0
        %775 = vmatprep.mubr.bf16.mxu0 0
        %776 = vmatmul.mubr.bf16.gmra.mrb[0].mxu0 %v297
        %v777 = vpop.f32.mrb[0].mxu0
        %v778 = vadd.f32 0.0, %v777
        %v779 = vpop.f32.mrb[0].mxu0
        %v780 = vpop.f32.mrb[0].mxu0
        %v781 = vadd.f32 0.0, %v780
        %v782 = vpop.f32.mrb[0].mxu0
        %783 = vmatprep.mubr.bf16.mxu0 0
        %784 = vmatmul.mubr.bf16.gmra.mrb[0].mxu0 %v298
        %v785 = vpop.f32.mrb[0].mxu0
        %v786 = vadd.f32 0.0, %v785
        %v787 = vpop.f32.mrb[0].mxu0
        %v788 = vpop.f32.mrb[0].mxu0
        %v789 = vadd.f32 0.0, %v788
        %v790 = vpop.f32.mrb[0].mxu0
        %791 = vmatprep.mubr.bf16.mxu0 0
        %792 = vmatmul.mubr.bf16.gmra.mrb[0].mxu0 %v299
        %v793 = vpop.f32.mrb[0].mxu0
        %v794 = vadd.f32 0.0, %v793
        %v795 = vpop.f32.mrb[0].mxu0
        %v796 = vpop.f32.mrb[0].mxu0
        %v797 = vadd.f32 0.0, %v796
        %v798 = vpop.f32.mrb[0].mxu0
        %799 = vmatprep.mubr.bf16.mxu0 0
        %800 = vmatmul.mubr.bf16.gmra.mrb[0].mxu0 %v300
        %v801 = vpop.f32.mrb[0].mxu0
        %v802 = vadd.f32 0.0, %v801
        %v803 = vpop.f32.mrb[0].mxu0
        %v804 = vpop.f32.mrb[0].mxu0
        %v805 = vadd.f32 0.0, %v804
        %v806 = vpop.f32.mrb[0].mxu0
        %807 = vmatprep.mubr.bf16.mxu0 0
        %808 = vmatmul.mubr.bf16.gmra.mrb[0].mxu0 %v301
        %v809 = vpop.f32.mrb[0].mxu0
        %v810 = vadd.f32 0.0, %v809
        %v811 = vpop.f32.mrb[0].mxu0
        %v812 = vpop.f32.mrb[0].mxu0
        %v813 = vadd.f32 0.0, %v812
        %v814 = vpop.f32.mrb[0].mxu0
        %815 = vdwg.mxu0
        %v816 = vpack.c.bf16 %v501, %v497
        %v817 = vpack.c.bf16 %v511, %v507
        %v818 = vpack.c.bf16 %v521, %v517
        %v819 = vpack.c.bf16 %v531, %v527
        %v820 = vpack.c.bf16 %v541, %v537
        %v821 = vpack.c.bf16 %v551, %v547
        %v822 = vpack.c.bf16 %v561, %v557
        %v823 = vpack.c.bf16 %v571, %v567
        %v824 = vpack.c.bf16 %v581, %v577
        %v825 = vpack.c.bf16 %v591, %v587
        %v826 = vpack.c.bf16 %v601, %v597
        %v827 = vpack.c.bf16 %v611, %v607
        %v828 = vpack.c.bf16 %v621, %v617
        %v829 = vpack.c.bf16 %v631, %v627
        %v830 = vpack.c.bf16 %v641, %v637
        %v831 = vpack.c.bf16 %v651, %v647
        %v848 = vunpack.c.l.b16 %v816
        %v849 = vunpack.c.h.b16 %v816
        %v850 = vunpack.c.l.b16 %v817
        %v851 = vunpack.c.h.b16 %v817
        %v852 = vunpack.c.l.b16 %v818
        %v853 = vunpack.c.h.b16 %v818
        %v854 = vunpack.c.l.b16 %v819
        %v855 = vunpack.c.h.b16 %v819
        %v856 = vunpack.c.l.b16 %v820
        %v857 = vunpack.c.h.b16 %v820
        %v858 = vunpack.c.l.b16 %v821
        %v859 = vunpack.c.h.b16 %v821
        %v860 = vunpack.c.l.b16 %v822
        %v861 = vunpack.c.h.b16 %v822
        %v862 = vunpack.c.l.b16 %v823
        %v863 = vunpack.c.h.b16 %v823
        %v864 = vunpack.c.l.b16 %v824
        %v865 = vunpack.c.h.b16 %v824
        %v866 = vunpack.c.l.b16 %v825
        %v867 = vunpack.c.h.b16 %v825
        %v868 = vunpack.c.l.b16 %v826
        %v869 = vunpack.c.h.b16 %v826
        %v870 = vunpack.c.l.b16 %v827
        %v871 = vunpack.c.h.b16 %v827
        %v872 = vunpack.c.l.b16 %v828
        %v873 = vunpack.c.h.b16 %v828
        %v874 = vunpack.c.l.b16 %v829
        %v875 = vunpack.c.h.b16 %v829
        %v876 = vunpack.c.l.b16 %v830
        %v877 = vunpack.c.h.b16 %v830
        %v878 = vunpack.c.l.b16 %v831
        %v879 = vunpack.c.h.b16 %v831
        %v880 = vpack.c.b16 %v848, %v848
        %v881 = vpack.c.b16 %v849, %v849
        %v882 = vpack.c.b16 %v850, %v850
        %v883 = vpack.c.b16 %v851, %v851
        %v884 = vpack.c.b16 %v852, %v852
        %v885 = vpack.c.b16 %v853, %v853
        %v886 = vpack.c.b16 %v854, %v854
        %v887 = vpack.c.b16 %v855, %v855
        %v888 = vpack.c.b16 %v856, %v856
        %v889 = vpack.c.b16 %v857, %v857
        %v890 = vpack.c.b16 %v858, %v858
        %v891 = vpack.c.b16 %v859, %v859
        %v892 = vpack.c.b16 %v860, %v860
        %v893 = vpack.c.b16 %v861, %v861
        %v894 = vpack.c.b16 %v862, %v862
        %v895 = vpack.c.b16 %v863, %v863
        %v896 = vpack.c.b16 %v864, %v864
        %v897 = vpack.c.b16 %v865, %v865
        %v898 = vpack.c.b16 %v866, %v866
        %v899 = vpack.c.b16 %v867, %v867
        %v900 = vpack.c.b16 %v868, %v868
        %v901 = vpack.c.b16 %v869, %v869
        %v902 = vpack.c.b16 %v870, %v870
        %v903 = vpack.c.b16 %v871, %v871
        %v904 = vpack.c.b16 %v872, %v872
        %v905 = vpack.c.b16 %v873, %v873
        %v906 = vpack.c.b16 %v874, %v874
        %v907 = vpack.c.b16 %v875, %v875
        %v908 = vpack.c.b16 %v876, %v876
        %v909 = vpack.c.b16 %v877, %v877
        %v910 = vpack.c.b16 %v878, %v878
        %v911 = vpack.c.b16 %v879, %v879
        %944 = vst [vmem:[%s234] sm:$0xf] %v880
        %945 = vst [vmem:[%s234 + $0x4] sm:$0xf] %v881
        %946 = vst [vmem:[%s234 + $0x8] sm:$0xf] %v882
        %947 = vst [vmem:[%s234 + $0xc] sm:$0xf] %v883
        %948 = vst [vmem:[%s234 + $0x10] sm:$0xf] %v884
        %949 = vst [vmem:[%s234 + $0x14] sm:$0xf] %v885
        %950 = vst [vmem:[%s234 + $0x18] sm:$0xf] %v886
        %951 = vst [vmem:[%s234 + $0x1c] sm:$0xf] %v887
        %952 = vst [vmem:[%s234 + $0x20] sm:$0xf] %v888
        %953 = vst [vmem:[%s234 + $0x24] sm:$0xf] %v889
        %954 = vst [vmem:[%s234 + $0x28] sm:$0xf] %v890
        %955 = vst [vmem:[%s234 + $0x2c] sm:$0xf] %v891
        %956 = vst [vmem:[%s234 + $0x30] sm:$0xf] %v892
        %957 = vst [vmem:[%s234 + $0x34] sm:$0xf] %v893
        %958 = vst [vmem:[%s234 + $0x38] sm:$0xf] %v894
        %959 = vst [vmem:[%s234 + $0x3c] sm:$0xf] %v895
        %960 = vst [vmem:[%s234 + $0x40] sm:$0xf] %v896
        %961 = vst [vmem:[%s234 + $0x44] sm:$0xf] %v897
        %962 = vst [vmem:[%s234 + $0x48] sm:$0xf] %v898
        %963 = vst [vmem:[%s234 + $0x4c] sm:$0xf] %v899
        %964 = vst [vmem:[%s234 + $0x50] sm:$0xf] %v900
        %965 = vst [vmem:[%s234 + $0x54] sm:$0xf] %v901
        %966 = vst [vmem:[%s234 + $0x58] sm:$0xf] %v902
        %967 = vst [vmem:[%s234 + $0x5c] sm:$0xf] %v903
        %968 = vst [vmem:[%s234 + $0x60] sm:$0xf] %v904
        %969 = vst [vmem:[%s234 + $0x64] sm:$0xf] %v905
        %970 = vst [vmem:[%s234 + $0x68] sm:$0xf] %v906
        %971 = vst [vmem:[%s234 + $0x6c] sm:$0xf] %v907
        %972 = vst [vmem:[%s234 + $0x70] sm:$0xf] %v908
        %973 = vst [vmem:[%s234 + $0x74] sm:$0xf] %v909
        %974 = vst [vmem:[%s234 + $0x78] sm:$0xf] %v910
        %975 = vst [vmem:[%s234 + $0x7c] sm:$0xf] %v911
        %v976 = vpack.c.bf16 %v503, %v499
        %v977 = vpack.c.bf16 %v513, %v509
        %v978 = vpack.c.bf16 %v523, %v519
        %v979 = vpack.c.bf16 %v533, %v529
        %v980 = vpack.c.bf16 %v543, %v539
        %v981 = vpack.c.bf16 %v553, %v549
        %v982 = vpack.c.bf16 %v563, %v559
        %v983 = vpack.c.bf16 %v573, %v569
        %v984 = vpack.c.bf16 %v583, %v579
        %v985 = vpack.c.bf16 %v593, %v589
        %v986 = vpack.c.bf16 %v603, %v599
        %v987 = vpack.c.bf16 %v613, %v609
        %v988 = vpack.c.bf16 %v623, %v619
        %v989 = vpack.c.bf16 %v633, %v629
        %v990 = vpack.c.bf16 %v643, %v639
        %v991 = vpack.c.bf16 %v653, %v649
        %v1008 = vunpack.c.l.b16 %v976
        %v1009 = vunpack.c.h.b16 %v976
        %v1010 = vunpack.c.l.b16 %v977
        %v1011 = vunpack.c.h.b16 %v977
        %v1012 = vunpack.c.l.b16 %v978
        %v1013 = vunpack.c.h.b16 %v978
        %v1014 = vunpack.c.l.b16 %v979
        %v1015 = vunpack.c.h.b16 %v979
        %v1016 = vunpack.c.l.b16 %v980
        %v1017 = vunpack.c.h.b16 %v980
        %v1018 = vunpack.c.l.b16 %v981
        %v1019 = vunpack.c.h.b16 %v981
        %v1020 = vunpack.c.l.b16 %v982
        %v1021 = vunpack.c.h.b16 %v982
        %v1022 = vunpack.c.l.b16 %v983
        %v1023 = vunpack.c.h.b16 %v983
        %v1024 = vunpack.c.l.b16 %v984
        %v1025 = vunpack.c.h.b16 %v984
        %v1026 = vunpack.c.l.b16 %v985
        %v1027 = vunpack.c.h.b16 %v985
        %v1028 = vunpack.c.l.b16 %v986
        %v1029 = vunpack.c.h.b16 %v986
        %v1030 = vunpack.c.l.b16 %v987
        %v1031 = vunpack.c.h.b16 %v987
        %v1032 = vunpack.c.l.b16 %v988
        %v1033 = vunpack.c.h.b16 %v988
        %v1034 = vunpack.c.l.b16 %v989
        %v1035 = vunpack.c.h.b16 %v989
        %v1036 = vunpack.c.l.b16 %v990
        %v1037 = vunpack.c.h.b16 %v990
        %v1038 = vunpack.c.l.b16 %v991
        %v1039 = vunpack.c.h.b16 %v991
        %v1040 = vpack.c.b16 %v1008, %v1008
        %v1041 = vpack.c.b16 %v1009, %v1009
        %v1042 = vpack.c.b16 %v1010, %v1010
        %v1043 = vpack.c.b16 %v1011, %v1011
        %v1044 = vpack.c.b16 %v1012, %v1012
        %v1045 = vpack.c.b16 %v1013, %v1013
        %v1046 = vpack.c.b16 %v1014, %v1014
        %v1047 = vpack.c.b16 %v1015, %v1015
        %v1048 = vpack.c.b16 %v1016, %v1016
        %v1049 = vpack.c.b16 %v1017, %v1017
        %v1050 = vpack.c.b16 %v1018, %v1018
        %v1051 = vpack.c.b16 %v1019, %v1019
        %v1052 = vpack.c.b16 %v1020, %v1020
        %v1053 = vpack.c.b16 %v1021, %v1021
        %v1054 = vpack.c.b16 %v1022, %v1022
        %v1055 = vpack.c.b16 %v1023, %v1023
        %v1056 = vpack.c.b16 %v1024, %v1024
        %v1057 = vpack.c.b16 %v1025, %v1025
        %v1058 = vpack.c.b16 %v1026, %v1026
        %v1059 = vpack.c.b16 %v1027, %v1027
        %v1060 = vpack.c.b16 %v1028, %v1028
        %v1061 = vpack.c.b16 %v1029, %v1029
        %v1062 = vpack.c.b16 %v1030, %v1030
        %v1063 = vpack.c.b16 %v1031, %v1031
        %v1064 = vpack.c.b16 %v1032, %v1032
        %v1065 = vpack.c.b16 %v1033, %v1033
        %v1066 = vpack.c.b16 %v1034, %v1034
        %v1067 = vpack.c.b16 %v1035, %v1035
        %v1068 = vpack.c.b16 %v1036, %v1036
        %v1069 = vpack.c.b16 %v1037, %v1037
        %v1070 = vpack.c.b16 %v1038, %v1038
        %v1071 = vpack.c.b16 %v1039, %v1039
        %1104 = vst [vmem:[%s241] sm:$0xf] %v1040
        %1105 = vst [vmem:[%s241 + $0x4] sm:$0xf] %v1041
        %1106 = vst [vmem:[%s241 + $0x8] sm:$0xf] %v1042
        %1107 = vst [vmem:[%s241 + $0xc] sm:$0xf] %v1043
        %1108 = vst [vmem:[%s241 + $0x10] sm:$0xf] %v1044
        %1109 = vst [vmem:[%s241 + $0x14] sm:$0xf] %v1045
        %1110 = vst [vmem:[%s241 + $0x18] sm:$0xf] %v1046
        %1111 = vst [vmem:[%s241 + $0x1c] sm:$0xf] %v1047
        %1112 = vst [vmem:[%s241 + $0x20] sm:$0xf] %v1048
        %1113 = vst [vmem:[%s241 + $0x24] sm:$0xf] %v1049
        %1114 = vst [vmem:[%s241 + $0x28] sm:$0xf] %v1050
        %1115 = vst [vmem:[%s241 + $0x2c] sm:$0xf] %v1051
        %1116 = vst [vmem:[%s241 + $0x30] sm:$0xf] %v1052
        %1117 = vst [vmem:[%s241 + $0x34] sm:$0xf] %v1053
        %1118 = vst [vmem:[%s241 + $0x38] sm:$0xf] %v1054
        %1119 = vst [vmem:[%s241 + $0x3c] sm:$0xf] %v1055
        %1120 = vst [vmem:[%s241 + $0x40] sm:$0xf] %v1056
        %1121 = vst [vmem:[%s241 + $0x44] sm:$0xf] %v1057
        %1122 = vst [vmem:[%s241 + $0x48] sm:$0xf] %v1058
        %1123 = vst [vmem:[%s241 + $0x4c] sm:$0xf] %v1059
        %1124 = vst [vmem:[%s241 + $0x50] sm:$0xf] %v1060
        %1125 = vst [vmem:[%s241 + $0x54] sm:$0xf] %v1061
        %1126 = vst [vmem:[%s241 + $0x58] sm:$0xf] %v1062
        %1127 = vst [vmem:[%s241 + $0x5c] sm:$0xf] %v1063
        %1128 = vst [vmem:[%s241 + $0x60] sm:$0xf] %v1064
        %1129 = vst [vmem:[%s241 + $0x64] sm:$0xf] %v1065
        %1130 = vst [vmem:[%s241 + $0x68] sm:$0xf] %v1066
        %1131 = vst [vmem:[%s241 + $0x6c] sm:$0xf] %v1067
        %1132 = vst [vmem:[%s241 + $0x70] sm:$0xf] %v1068
        %1133 = vst [vmem:[%s241 + $0x74] sm:$0xf] %v1069
        %1134 = vst [vmem:[%s241 + $0x78] sm:$0xf] %v1070
        %1135 = vst [vmem:[%s241 + $0x7c] sm:$0xf] %v1071
        %v1136 = vpack.c.bf16 %v693, %v690
        %v1137 = vpack.c.bf16 %v701, %v698
        %v1138 = vpack.c.bf16 %v709, %v706
        %v1139 = vpack.c.bf16 %v717, %v714
        %v1140 = vpack.c.bf16 %v725, %v722
        %v1141 = vpack.c.bf16 %v733, %v730
        %v1142 = vpack.c.bf16 %v741, %v738
        %v1143 = vpack.c.bf16 %v749, %v746
        %v1144 = vpack.c.bf16 %v757, %v754
        %v1145 = vpack.c.bf16 %v765, %v762
        %v1146 = vpack.c.bf16 %v773, %v770
        %v1147 = vpack.c.bf16 %v781, %v778
        %v1148 = vpack.c.bf16 %v789, %v786
        %v1149 = vpack.c.bf16 %v797, %v794
        %v1150 = vpack.c.bf16 %v805, %v802
        %v1151 = vpack.c.bf16 %v813, %v810
        %v1168 = vunpack.c.l.b16 %v1136
        %v1169 = vunpack.c.h.b16 %v1136
        %v1170 = vunpack.c.l.b16 %v1137
        %v1171 = vunpack.c.h.b16 %v1137
        %v1172 = vunpack.c.l.b16 %v1138
        %v1173 = vunpack.c.h.b16 %v1138
        %v1174 = vunpack.c.l.b16 %v1139
        %v1175 = vunpack.c.h.b16 %v1139
        %v1176 = vunpack.c.l.b16 %v1140
        %v1177 = vunpack.c.h.b16 %v1140
        %v1178 = vunpack.c.l.b16 %v1141
        %v1179 = vunpack.c.h.b16 %v1141
        %v1180 = vunpack.c.l.b16 %v1142
        %v1181 = vunpack.c.h.b16 %v1142
        %v1182 = vunpack.c.l.b16 %v1143
        %v1183 = vunpack.c.h.b16 %v1143
        %v1184 = vunpack.c.l.b16 %v1144
        %v1185 = vunpack.c.h.b16 %v1144
        %v1186 = vunpack.c.l.b16 %v1145
        %v1187 = vunpack.c.h.b16 %v1145
        %v1188 = vunpack.c.l.b16 %v1146
        %v1189 = vunpack.c.h.b16 %v1146
        %v1190 = vunpack.c.l.b16 %v1147
        %v1191 = vunpack.c.h.b16 %v1147
        %v1192 = vunpack.c.l.b16 %v1148
        %v1193 = vunpack.c.h.b16 %v1148
        %v1194 = vunpack.c.l.b16 %v1149
        %v1195 = vunpack.c.h.b16 %v1149
        %v1196 = vunpack.c.l.b16 %v1150
        %v1197 = vunpack.c.h.b16 %v1150
        %v1198 = vunpack.c.l.b16 %v1151
        %v1199 = vunpack.c.h.b16 %v1151
        %v1200 = vpack.c.b16 %v1168, %v1168
        %v1201 = vpack.c.b16 %v1169, %v1169
        %v1202 = vpack.c.b16 %v1170, %v1170
        %v1203 = vpack.c.b16 %v1171, %v1171
        %v1204 = vpack.c.b16 %v1172, %v1172
        %v1205 = vpack.c.b16 %v1173, %v1173
        %v1206 = vpack.c.b16 %v1174, %v1174
        %v1207 = vpack.c.b16 %v1175, %v1175
        %v1208 = vpack.c.b16 %v1176, %v1176
        %v1209 = vpack.c.b16 %v1177, %v1177
        %v1210 = vpack.c.b16 %v1178, %v1178
        %v1211 = vpack.c.b16 %v1179, %v1179
        %v1212 = vpack.c.b16 %v1180, %v1180
        %v1213 = vpack.c.b16 %v1181, %v1181
        %v1214 = vpack.c.b16 %v1182, %v1182
        %v1215 = vpack.c.b16 %v1183, %v1183
        %v1216 = vpack.c.b16 %v1184, %v1184
        %v1217 = vpack.c.b16 %v1185, %v1185
        %v1218 = vpack.c.b16 %v1186, %v1186
        %v1219 = vpack.c.b16 %v1187, %v1187
        %v1220 = vpack.c.b16 %v1188, %v1188
        %v1221 = vpack.c.b16 %v1189, %v1189
        %v1222 = vpack.c.b16 %v1190, %v1190
        %v1223 = vpack.c.b16 %v1191, %v1191
        %v1224 = vpack.c.b16 %v1192, %v1192
        %v1225 = vpack.c.b16 %v1193, %v1193
        %v1226 = vpack.c.b16 %v1194, %v1194
        %v1227 = vpack.c.b16 %v1195, %v1195
        %v1228 = vpack.c.b16 %v1196, %v1196
        %v1229 = vpack.c.b16 %v1197, %v1197
        %v1230 = vpack.c.b16 %v1198, %v1198
        %v1231 = vpack.c.b16 %v1199, %v1199
        %1264 = vst [vmem:[%s248] sm:$0xf] %v1200
        %1265 = vst [vmem:[%s248 + $0x4] sm:$0xf] %v1201
        %1266 = vst [vmem:[%s248 + $0x8] sm:$0xf] %v1202
        %1267 = vst [vmem:[%s248 + $0xc] sm:$0xf] %v1203
        %1268 = vst [vmem:[%s248 + $0x10] sm:$0xf] %v1204
        %1269 = vst [vmem:[%s248 + $0x14] sm:$0xf] %v1205
        %1270 = vst [vmem:[%s248 + $0x18] sm:$0xf] %v1206
        %1271 = vst [vmem:[%s248 + $0x1c] sm:$0xf] %v1207
        %1272 = vst [vmem:[%s248 + $0x20] sm:$0xf] %v1208
        %1273 = vst [vmem:[%s248 + $0x24] sm:$0xf] %v1209
        %1274 = vst [vmem:[%s248 + $0x28] sm:$0xf] %v1210
        %1275 = vst [vmem:[%s248 + $0x2c] sm:$0xf] %v1211
        %1276 = vst [vmem:[%s248 + $0x30] sm:$0xf] %v1212
        %1277 = vst [vmem:[%s248 + $0x34] sm:$0xf] %v1213
        %1278 = vst [vmem:[%s248 + $0x38] sm:$0xf] %v1214
        %1279 = vst [vmem:[%s248 + $0x3c] sm:$0xf] %v1215
        %1280 = vst [vmem:[%s248 + $0x40] sm:$0xf] %v1216
        %1281 = vst [vmem:[%s248 + $0x44] sm:$0xf] %v1217
        %1282 = vst [vmem:[%s248 + $0x48] sm:$0xf] %v1218
        %1283 = vst [vmem:[%s248 + $0x4c] sm:$0xf] %v1219
        %1284 = vst [vmem:[%s248 + $0x50] sm:$0xf] %v1220
        %1285 = vst [vmem:[%s248 + $0x54] sm:$0xf] %v1221
        %1286 = vst [vmem:[%s248 + $0x58] sm:$0xf] %v1222
        %1287 = vst [vmem:[%s248 + $0x5c] sm:$0xf] %v1223
        %1288 = vst [vmem:[%s248 + $0x60] sm:$0xf] %v1224
        %1289 = vst [vmem:[%s248 + $0x64] sm:$0xf] %v1225
        %1290 = vst [vmem:[%s248 + $0x68] sm:$0xf] %v1226
        %1291 = vst [vmem:[%s248 + $0x6c] sm:$0xf] %v1227
        %1292 = vst [vmem:[%s248 + $0x70] sm:$0xf] %v1228
        %1293 = vst [vmem:[%s248 + $0x74] sm:$0xf] %v1229
        %1294 = vst [vmem:[%s248 + $0x78] sm:$0xf] %v1230
        %1295 = vst [vmem:[%s248 + $0x7c] sm:$0xf] %v1231
        %s1296 = sand.u32 %s81, 1
        %s1297 = scalar_lea.sflag [#allocation4], %s1296
        %s1298 = sand.u32 %s81, 1
        %s1299 = smul.addr %s1298, 128
        %s1300 = scalar_lea.vmem [#allocation7], %s1299
        %s1301 = sand.u32 %s26, 1
        %s1302 = scalar_lea.sflag [#allocation9], %s1301
        %s1303 = sand.u32 %s107, 1
        %s1304 = smul.addr %s1303, 128
        %s1305 = scalar_lea.vmem [#allocation8], %s1304
        %s1306 = sand.u32 %s26, 1
        %s1307 = scalar_lea.sflag [#allocation9], %s1306
        %s1308 = sand.u32 %s133, 1
        %s1309 = smul.addr %s1308, 128
        %s1310 = scalar_lea.vmem [#allocation10], %s1309
        // Predicated region
        $region37: #{tpu_custom_call.1} parent=27 // pred_check
          %p1311 = pneg %p91
        $region38: #{tpu_custom_call.1} parent=27 // pred_check_branch
          %1313 = sbr.rel (%p1311) target = $region40
        $region39: #{tpu_custom_call.1} parent=27 // pred_region
          %s1314 = smul.u32 32, %s26
          %s1316 = ssub.s32 2048, 2048
          %1317 = vsyncadd %s1297, %s1316
          %s1318 = smul.addr %s1314, 64
          %s1319 = scalar_lea.hbm %s2, %s1318
          %s1320 = sshll.u32 %s1300, 4
          %s1321 = int_to_ptr.vmem [resolvable:$true] %s1320
          %1326 = dma.vmem_to_hbm [thread:$0]  %s1321, 2048, %s1319, %s1297, 64, 64, 4
        $region40: #{tpu_custom_call.1} parent=27 // pred_fallthru
          _
        // Predicated region
        $region41: #{tpu_custom_call.1} parent=27 // pred_check
          %p1327 = pneg %p117
        $region42: #{tpu_custom_call.1} parent=27 // pred_check_branch
          %1329 = sbr.rel (%p1327) target = $region44
        $region43: #{tpu_custom_call.1} parent=27 // pred_region
          %s1330 = smul.u32 32, %s26
          %s1332 = ssub.s32 2048, 2048
          %1333 = vsyncadd %s1302, %s1332
          %s1334 = smul.addr %s1330, 64
          %s1335 = scalar_lea.hbm %s3, %s1334
          %s1336 = sshll.u32 %s1305, 4
          %s1337 = int_to_ptr.vmem [resolvable:$true] %s1336
          %1342 = dma.vmem_to_hbm [thread:$0]  %s1337, 2048, %s1335, %s1302, 64, 64, 4
        $region44: #{tpu_custom_call.1} parent=27 // pred_fallthru
          _
        // Predicated region
        $region45: #{tpu_custom_call.1} parent=27 // pred_check
          %p1343 = pneg %p143
        $region46: #{tpu_custom_call.1} parent=27 // pred_check_branch
          %1345 = sbr.rel (%p1343) target = $region48
        $region47: #{tpu_custom_call.1} parent=27 // pred_region
          %s1346 = smul.u32 32, %s26
          %s1348 = ssub.s32 2048, 2048
          %1349 = vsyncadd %s1307, %s1348
          %s1350 = smul.addr %s1346, 64
          %s1351 = scalar_lea.hbm %s4, %s1350
          %s1352 = sshll.u32 %s1310, 4
          %s1353 = int_to_ptr.vmem [resolvable:$true] %s1352
          %1358 = dma.vmem_to_hbm [thread:$0]  %s1353, 2048, %s1351, %s1307, 64, 64, 4
        $region48: #{tpu_custom_call.1} parent=27 // pred_fallthru
          _
      $region28: #{tpu_custom_call.1} parent=5 // pred_fallthru
        _
      %p1359 = scmp.le.s32.totalorder 2, %s21
      // Predicated region
      $region49: #{tpu_custom_call.1} parent=5 // pred_check
        %p1360 = pneg %p1359
      $region50: #{tpu_custom_call.1} parent=5 // pred_check_branch
        %1362 = sbr.rel (%p1360) target = $region52
      $region51: #{tpu_custom_call.1} parent=5 // pred_region
        %s1363 = ssub.s32 %s21, 2
        // Predicated region
        $region53: #{tpu_custom_call.1} parent=51 // pred_check
          %p1364 = pneg %p97
        $region54: #{tpu_custom_call.1} parent=51 // pred_check_branch
          %1366 = sbr.rel (%p1364) target = $region56
        $region55: #{tpu_custom_call.1} parent=51 // pred_region
          %s1367 = sand.u32 %s82, 1
          %s1368 = scalar_lea.sflag [#allocation4], %s1367
          %s1369 = sand.u32 %s82, 1
          %s1370 = smul.addr %s1369, 128
          %s1371 = scalar_lea.vmem [#allocation7], %s1370
          %1372 = dma.done %s1368, 2048
        $region56: #{tpu_custom_call.1} parent=51 // pred_fallthru
          _
        // Predicated region
        $region57: #{tpu_custom_call.1} parent=51 // pred_check
          %p1373 = pneg %p123
        $region58: #{tpu_custom_call.1} parent=51 // pred_check_branch
          %1375 = sbr.rel (%p1373) target = $region60
        $region59: #{tpu_custom_call.1} parent=51 // pred_region
          %s1376 = sand.u32 %s27, 1
          %s1377 = scalar_lea.sflag [#allocation9], %s1376
          %s1378 = sand.u32 %s108, 1
          %s1379 = smul.addr %s1378, 128
          %s1380 = scalar_lea.vmem [#allocation8], %s1379
          %1381 = dma.done %s1377, 2048
        $region60: #{tpu_custom_call.1} parent=51 // pred_fallthru
          _
        // Predicated region
        $region61: #{tpu_custom_call.1} parent=51 // pred_check
          %p1382 = pneg %p149
        $region62: #{tpu_custom_call.1} parent=51 // pred_check_branch
          %1384 = sbr.rel (%p1382) target = $region64
        $region63: #{tpu_custom_call.1} parent=51 // pred_region
          %s1385 = sand.u32 %s27, 1
          %s1386 = scalar_lea.sflag [#allocation9], %s1385
          %s1387 = sand.u32 %s134, 1
          %s1388 = smul.addr %s1387, 128
          %s1389 = scalar_lea.vmem [#allocation10], %s1388
          %1390 = dma.done %s1386, 2048
        $region64: #{tpu_custom_call.1} parent=51 // pred_fallthru
          _
      $region52: #{tpu_custom_call.1} parent=5 // pred_fallthru
        _
    $region6: #{tpu_custom_call.1} parent=1 // loop_footer
      %s25 = sadd.s32 1, %s21
    $region7: #{tpu_custom_call.1} parent=1 // loop_footer_branch
      %20 = sbr.rel target = $region3
    $region8: #{tpu_custom_call.1} parent=1 // loop_exit
      _
    %1391 = vsyncpa [#allocation3], 1
    %s1392 = scalar_lea.sflag [#allocation3], 1
    %1393 = vsyncpa %s1392, 1
    %1394 = vsyncpa [#allocation6], 1
    %1395 = vsyncpa [#allocation4], 1
    %s1396 = scalar_lea.sflag [#allocation4], 1
    %1397 = vsyncpa %s1396, 1
    %1398 = vsyncpa [#allocation9], 1
    %s1399 = scalar_lea.sflag [#allocation9], 1
    %1400 = vsyncpa %s1399, 1

</llo_original>
